<compile_context>
chip_gen: v7x
topology: tpu7x:2x2x1
jax: 0.10.0
libtpu: 0.0.40
codegen_flags: <defaults>
</compile_context>

<pallas_src>
import jax
import jax.numpy as jnp
from jax.experimental import pallas as pl
from jax.experimental.pallas import tpu as pltpu


def _vn_linear_kernel(w_ref, x_ref, o_ref):
    # w_ref: [C_out, C_in] (resident, f32), x_ref: [b_blk, C_in, T],
    # o_ref: [b_blk, C_out, T].  T is on the 128-lane axis -> full-width stores.
    w = w_ref[...]
    for b in range(x_ref.shape[0]):  # b_blk is 1 or 2 -> static unroll
        o_ref[b] = jnp.dot(
            w, x_ref[b].astype(w.dtype), preferred_element_type=jnp.float32
        ).astype(o_ref.dtype)


_TILE_CANDIDATES = (131072, 65536, 32768, 16384, 8192, 4096,
                    2048, 1024, 512, 256, 128)
_VMEM_BUDGET_BYTES = 24 * 1024 * 1024  # double-buffered in+out, < 32 MiB scoped default


def _round_up(x, m):
    return ((x + m - 1) // m) * m


def _choose_tile(M, b_blk, c_in, c_out, itemsize):
    """Pick (tile, padded_M): largest lane tile whose double-buffered in+out
    VMEM footprint fits the budget and whose spatial padding waste is small."""
    rows = _round_up(c_in, 8) + _round_up(c_out, 8)  # sublane-padded rows/step
    mp_min = _round_up(M, 128)                       # never sub-128-lane blocks
    max_waste = max(M // 8, 128)                     # cap padding overhead
    for tile in _TILE_CANDIDATES:
        footprint = 2 * b_blk * rows * tile * itemsize  # 2 = double buffering
        if footprint > _VMEM_BUDGET_BYTES:
            continue
        padded = _round_up(mp_min, tile)
        if padded - M <= max_waste:
            return tile, padded
    return 128, mp_min


def vn_simple_linear(x, weight):
    """x: [B, C_in, 3, N, ...], weight: [C_out, C_in] -> [B, C_out, 3, N, ...]."""
    C_out, C_in = weight.shape
    assert x.shape[1] == C_in
    B = x.shape[0]
    trailing = x.shape[2:]
    M = 1
    for s in trailing:
        M *= s

    # Keep weight math in (at least) f32, matching PyTorch's f32 Linear weights.
    compute_dtype = jnp.promote_types(x.dtype, weight.dtype)
    w = weight.astype(compute_dtype)

    # Free reshape: merge trailing spatial dims; channel axis untouched.
    x3 = x.reshape(B, C_in, M)

    # Batch pairing: 2 batches per grid step when B is even.
    b_blk = 2 if (B % 2 == 0 and B >= 2) else 1

    tile, Mp = _choose_tile(M, b_blk, C_in, C_out, x.dtype.itemsize)

    # v7x has 2 TensorCores per chip: if the whole problem collapsed to one
    # grid step, split the spatial axis in two (no-op / harmless on v5e/v6e).
    if (B // b_blk) * (Mp // tile) < 2 and tile >= 256:
        tile //= 2

    if Mp != M:
        # Cheap contiguous zero-pad so every block is full-width (lane-dense).
        x3 = jnp.pad(x3, ((0, 0), (0, 0), (0, Mp - M)))

    grid = (B // b_blk, Mp // tile)

    cost = pl.CostEstimate(
        flops=2 * B * Mp * C_in * C_out,
        transcendentals=0,
        bytes_accessed=x.dtype.itemsize * B * Mp * (C_in + C_out)
        + w.size * w.dtype.itemsize,
    )

    out3 = pl.pallas_call(
        _vn_linear_kernel,
        out_shape=jax.ShapeDtypeStruct((B, C_out, Mp), x.dtype),
        grid=grid,
        in_specs=[
            # Weight: constant block index -> DMA'd once, stays resident in VMEM.
            pl.BlockSpec((C_out, C_in), lambda b, m: (0, 0)),
            # x tile: [b_blk, C_in, tile] (C_in = full extent; tile lane-dense).
            pl.BlockSpec((b_blk, C_in, tile), lambda b, m: (b, 0, m)),
        ],
        out_specs=pl.BlockSpec((b_blk, C_out, tile), lambda b, m: (b, 0, m)),
        compiler_params=pltpu.CompilerParams(
            dimension_semantics=("parallel", "parallel"),
        ),
        cost_estimate=cost,
    )(w, x3)

    # Drop spatial padding (if any) and restore the PyTorch output layout.
    return out3[..., :M].reshape(B, C_out, *trailing)


if __name__ == "__main__":
    B, C_in, C_out, N = 2, 4, 8, 16

    key = jax.random.PRNGKey(0)
    kx, kw = jax.random.split(key)

    x = jax.random.normal(kx, (B, C_in, 3, N), dtype=jnp.float32)
    # Deterministic weight init (mimics nn.Linear kaiming-uniform bound 1/sqrt(C_in)).
    bound = 1.0 / (C_in ** 0.5)
    weight = jax.random.uniform(
        kw, (C_out, C_in), dtype=jnp.float32, minval=-bound, maxval=bound
    )

    out = jax.block_until_ready(vn_simple_linear(x, weight))

    # Reference check (plain JAX einsum matching the PyTorch semantics).
    ref = jnp.einsum("oc,bcin->boin", weight, x)
    assert out.shape == (B, C_out, 3, N)
    assert jnp.allclose(out, ref, atol=1e-5, rtol=1e-5)

    print("KERNEL_OK")
</pallas_src>

<mosaic_0001>
module attributes {stable_mosaic.version = 11 : i64} {
  func.func @_vn_linear_kernel(%arg0: i32, %arg1: i32, %arg2: memref<8x4xf32, #tpu.memory_space<vmem>>, %arg3: memref<2x4x128xf32, #tpu.memory_space<vmem>>, %arg4: memref<2x8x128xf32, #tpu.memory_space<vmem>>) attributes {dimension_semantics = [#tpu.dimension_semantics<parallel>, #tpu.dimension_semantics<parallel>], iteration_bounds = array<i64: 1, 1>, scalar_prefetch = 0 : i64, scratch_operands = 0 : i64, tpu.core_type = #tpu.core_type<tc>, window_params = [{pipeline_mode = #tpu.pipeline_mode<synchronous>, transform_indices = @transform_0, window_bounds = array<i64: 8, 4>}, {transform_indices = @transform_1, window_bounds = array<i64: 2, 4, 128>}, {transform_indices = @transform_2, window_bounds = array<i64: 2, 8, 128>}]} {
    %c0 = arith.constant 0 : index
    %c0_0 = arith.constant 0 : index
    %0 = vector.load %arg2[%c0, %c0_0] : memref<8x4xf32, #tpu.memory_space<vmem>>, vector<8x4xf32>
    %c0_1 = arith.constant 0 : index
    %c0_2 = arith.constant 0 : index
    %c0_3 = arith.constant 0 : index
    %1 = vector.load %arg3[%c0_1, %c0_2, %c0_3] : memref<2x4x128xf32, #tpu.memory_space<vmem>>, vector<1x4x128xf32>
    %2 = vector.shape_cast %1 : vector<1x4x128xf32> to vector<4x128xf32>
    %cst = arith.constant dense<0.000000e+00> : vector<8x128xf32>
    %3 = tpu.matmul %0, %2, %cst {dimension_numbers = #tpu.dot_dimension_numbers<[1], [0], [0], [1], [0, 0, 1, 1], [], []>} : vector<8x4xf32>, vector<4x128xf32>, vector<8x128xf32> -> vector<8x128xf32>
    %c0_4 = arith.constant 0 : index
    %c0_5 = arith.constant 0 : index
    %c0_6 = arith.constant 0 : index
    %4 = vector.load %arg4[%c0_4, %c0_5, %c0_6] : memref<2x8x128xf32, #tpu.memory_space<vmem>>, vector<1x8x128xf32>
    %5 = vector.shape_cast %4 : vector<1x8x128xf32> to vector<8x128xf32>
    %6 = vector.shape_cast %3 : vector<8x128xf32> to vector<1x8x128xf32>
    tpu.vector_store %arg4[%c0_4, %c0_5, %c0_6], %6 {strides = array<i32>} : memref<2x8x128xf32, #tpu.memory_space<vmem>>, vector<1x8x128xf32>,
    %c1 = arith.constant 1 : index
    %c0_7 = arith.constant 0 : index
    %c0_8 = arith.constant 0 : index
    %7 = vector.load %arg3[%c1, %c0_7, %c0_8] : memref<2x4x128xf32, #tpu.memory_space<vmem>>, vector<1x4x128xf32>
    %8 = vector.shape_cast %7 : vector<1x4x128xf32> to vector<4x128xf32>
    %cst_9 = arith.constant dense<0.000000e+00> : vector<8x128xf32>
    %9 = tpu.matmul %0, %8, %cst_9 {dimension_numbers = #tpu.dot_dimension_numbers<[1], [0], [0], [1], [0, 0, 1, 1], [], []>} : vector<8x4xf32>, vector<4x128xf32>, vector<8x128xf32> -> vector<8x128xf32>
    %c1_10 = arith.constant 1 : index
    %c0_11 = arith.constant 0 : index
    %c0_12 = arith.constant 0 : index
    %10 = vector.load %arg4[%c1_10, %c0_11, %c0_12] : memref<2x8x128xf32, #tpu.memory_space<vmem>>, vector<1x8x128xf32>
    %11 = vector.shape_cast %10 : vector<1x8x128xf32> to vector<8x128xf32>
    %12 = vector.shape_cast %9 : vector<8x128xf32> to vector<1x8x128xf32>
    tpu.vector_store %arg4[%c1_10, %c0_11, %c0_12], %12 {strides = array<i32>} : memref<2x8x128xf32, #tpu.memory_space<vmem>>, vector<1x8x128xf32>,
    return
  }
  func.func @transform_0(%arg0: i32, %arg1: i32) -> (i32, i32) {
    %c0_i32 = arith.constant 0 : i32
    %c0_i32_0 = arith.constant 0 : i32
    %c0_i32_1 = arith.constant 0 : i32
    return %c0_i32, %c0_i32_0 : i32, i32
  }
  func.func @transform_1(%arg0: i32, %arg1: i32) -> (i32, i32, i32) {
    %c0_i32 = arith.constant 0 : i32
    %c0_i32_0 = arith.constant 0 : i32
    return %arg0, %c0_i32, %arg1 : i32, i32, i32
  }
  func.func @transform_2(%arg0: i32, %arg1: i32) -> (i32, i32, i32) {
    %c0_i32 = arith.constant 0 : i32
    %c0_i32_0 = arith.constant 0 : i32
    return %arg0, %c0_i32, %arg1 : i32, i32, i32
  }
}

</mosaic_0001>

<llo_original>
// kernel: tpu_custom_call.1
$region0: #{tpu_custom_call.1}
  #allocation0 [shape = 'u32[]', space=smem, size = 0x4, offset = 0x4, fixed_abs, tag = 'smem constant byte address 0x4 - core index']
  #allocation1 [shape = 'u32[144,128]{1,0:T(1,128)}', space=vmem, size = 0x12000, scoped, tag = 'internal scratch']
  %s0 = inlined_call_operand.vmem [shape: f32[8,4], index: 0, kind: input, shape index: {}]
  %s1 = inlined_call_operand.vmem [shape: f32[2,4,128], index: 1, kind: input, shape index: {}]
  %s2 = inlined_call_operand.hbm [shape: f32[2,8,128], index: 2, kind: output, shape index: {}]
  %s3 = sld [smem:[#allocation0]]
  $region18: #{tpu_custom_call.1} parent=0
    _
  %s5 = ssub.s32 1, %s3
  %s6 = scalar_select 0, %s5, %s3
  $region1: #{tpu_custom_call.1} parent=0
    #allocation2 [shape = 'u8[8192]{0}', space=vmem, size = 0x2000, scoped, tag = 'output window, operand 0, single buffered']
    #allocation3 [shape = 's32[1]{0}', space=sflag, size = 0x4, scoped, tag = 'scoped memory for tpu_custom_call.1']
    %7 = vsyncpa [#allocation3], 0
    // Predicated region
    $region2: #{tpu_custom_call.1} parent=1 // pred_check
      _
    $region3: #{tpu_custom_call.1} parent=1 // pred_check_branch
      %9 = sbr.rel (0) target = $region5
    $region4: #{tpu_custom_call.1} parent=1 // pred_region
      _
    $region5: #{tpu_custom_call.1} parent=1 // pred_fallthru
      _
    // Predicated region
    $region6: #{tpu_custom_call.1} parent=1 // pred_check
      _
    $region7: #{tpu_custom_call.1} parent=1 // pred_check_branch
      %11 = sbr.rel (0) target = $region9
    $region8: #{tpu_custom_call.1} parent=1 // pred_region
      _
    $region9: #{tpu_custom_call.1} parent=1 // pred_fallthru
      _
    %v12 = vld [vmem:[%s0] sm:$0xff]
    %v13 = vld [vmem:[%s1] sm:$0xf]
    %vm14 = vcmask 31744
    %v16 = vsel %vm14, %v12, 0
    %vm18 = vcmask 1043456
    %v20 = vsel %vm18, %v13, 0
    %22 = vmatprep.subr.mxu0 0.0
    %23 = vmatpush1.msra.mxu0 %v20
    %24 = vmatprep.subr.mxu0 0.0
    %25 = vmatpush1.msra.mxu0 0.0
    %26 = vmatprep.subr.mxu0 0.0
    %27 = vmatpush1.msra.mxu0 0.0
    %28 = vmatprep.subr.mxu0 0.0
    %29 = vmatpush1.msra.mxu0 0.0
    %30 = vmatprep.subr.mxu0 0.0
    %31 = vmatpush1.msra.mxu0 0.0
    %32 = vmatprep.subr.mxu0 0.0
    %33 = vmatpush1.msra.mxu0 0.0
    %34 = vmatprep.subr.mxu0 0.0
    %35 = vmatpush1.msra.mxu0 0.0
    %36 = vmatprep.subr.mxu0 0.0
    %37 = vmatpush1.msra.mxu0 0.0
    %38 = vmatprep.subr.mxu0 0.0
    %39 = vmatpush1.msra.mxu0 0.0
    %40 = vmatprep.subr.mxu0 0.0
    %41 = vmatpush1.msra.mxu0 0.0
    %42 = vmatprep.subr.mxu0 0.0
    %43 = vmatpush1.msra.mxu0 0.0
    %44 = vmatprep.subr.mxu0 0.0
    %45 = vmatpush1.msra.mxu0 0.0
    %46 = vmatprep.subr.mxu0 0.0
    %47 = vmatpush1.msra.mxu0 0.0
    %48 = vmatprep.subr.mxu0 0.0
    %49 = vmatpush1.msra.mxu0 0.0
    %50 = vmatprep.subr.mxu0 0.0
    %51 = vmatpush1.msra.mxu0 0.0
    %52 = vmatprep.subr.mxu0 0.0
    %53 = vmatpush1.msra.mxu0 0.0
    %54 = vmatprep.subr.mxu0 0.0
    %55 = vmatpush1.msra.mxu0 0.0
    %56 = vmatprep.subr.mxu0 0.0
    %57 = vmatpush1.msra.mxu0 0.0
    %58 = vmatprep.subr.mxu0 0.0
    %59 = vmatpush1.msra.mxu0 0.0
    %60 = vmatprep.subr.mxu0 0.0
    %61 = vmatpush1.msra.mxu0 0.0
    %62 = vmatprep.subr.mxu0 0.0
    %63 = vmatpush1.msra.mxu0 0.0
    %64 = vmatprep.subr.mxu0 0.0
    %65 = vmatpush1.msra.mxu0 0.0
    %66 = vmatprep.subr.mxu0 0.0
    %67 = vmatpush1.msra.mxu0 0.0
    %68 = vmatprep.subr.mxu0 0.0
    %69 = vmatpush1.msra.mxu0 0.0
    %70 = vmatprep.subr.mxu0 0.0
    %71 = vmatpush1.msra.mxu0 0.0
    %72 = vmatprep.subr.mxu0 0.0
    %73 = vmatpush1.msra.mxu0 0.0
    %74 = vmatprep.subr.mxu0 0.0
    %75 = vmatpush1.msra.mxu0 0.0
    %76 = vmatprep.subr.mxu0 0.0
    %77 = vmatpush1.msra.mxu0 0.0
    %78 = vmatprep.subr.mxu0 0.0
    %79 = vmatpush1.msra.mxu0 0.0
    %80 = vmatprep.subr.mxu0 0.0
    %81 = vmatpush1.msra.mxu0 0.0
    %82 = vmatprep.subr.mxu0 0.0
    %83 = vmatpush1.msra.mxu0 0.0
    %84 = vmatprep.subr.mxu0 0.0
    %85 = vmatpush1.msra.mxu0 0.0
    %86 = vmatprep.mubr.f32.mxu0 0.0
    %87 = vmatmul.mubr.f32.gmra.mrb[0].mxu0 %v16
    %v88 = vpop.f32.mrb[0].mxu0
    %v89 = vadd.f32 0.0, %v88
    %v90 = vpop.f32.mrb[0].mxu0
    %91 = vdwg.mxu0
    %92 = vst [vmem:[#allocation2] sm:$0xff] %v89
    %s93 = scalar_lea.vmem %s1, 4
    %v94 = vld [vmem:[%s93] sm:$0xf]
    %v96 = vsel %vm18, %v94, 0
    %98 = vmatprep.subr.mxu0 0.0
    %99 = vmatpush1.msra.mxu0 %v96
    %100 = vmatprep.subr.mxu0 0.0
    %101 = vmatpush1.msra.mxu0 0.0
    %102 = vmatprep.subr.mxu0 0.0
    %103 = vmatpush1.msra.mxu0 0.0
    %104 = vmatprep.subr.mxu0 0.0
    %105 = vmatpush1.msra.mxu0 0.0
    %106 = vmatprep.subr.mxu0 0.0
    %107 = vmatpush1.msra.mxu0 0.0
    %108 = vmatprep.subr.mxu0 0.0
    %109 = vmatpush1.msra.mxu0 0.0
    %110 = vmatprep.subr.mxu0 0.0
    %111 = vmatpush1.msra.mxu0 0.0
    %112 = vmatprep.subr.mxu0 0.0
    %113 = vmatpush1.msra.mxu0 0.0
    %114 = vmatprep.subr.mxu0 0.0
    %115 = vmatpush1.msra.mxu0 0.0
    %116 = vmatprep.subr.mxu0 0.0
    %117 = vmatpush1.msra.mxu0 0.0
    %118 = vmatprep.subr.mxu0 0.0
    %119 = vmatpush1.msra.mxu0 0.0
    %120 = vmatprep.subr.mxu0 0.0
    %121 = vmatpush1.msra.mxu0 0.0
    %122 = vmatprep.subr.mxu0 0.0
    %123 = vmatpush1.msra.mxu0 0.0
    %124 = vmatprep.subr.mxu0 0.0
    %125 = vmatpush1.msra.mxu0 0.0
    %126 = vmatprep.subr.mxu0 0.0
    %127 = vmatpush1.msra.mxu0 0.0
    %128 = vmatprep.subr.mxu0 0.0
    %129 = vmatpush1.msra.mxu0 0.0
    %130 = vmatprep.subr.mxu0 0.0
    %131 = vmatpush1.msra.mxu0 0.0
    %132 = vmatprep.subr.mxu0 0.0
    %133 = vmatpush1.msra.mxu0 0.0
    %134 = vmatprep.subr.mxu0 0.0
    %135 = vmatpush1.msra.mxu0 0.0
    %136 = vmatprep.subr.mxu0 0.0
    %137 = vmatpush1.msra.mxu0 0.0
    %138 = vmatprep.subr.mxu0 0.0
    %139 = vmatpush1.msra.mxu0 0.0
    %140 = vmatprep.subr.mxu0 0.0
    %141 = vmatpush1.msra.mxu0 0.0
    %142 = vmatprep.subr.mxu0 0.0
    %143 = vmatpush1.msra.mxu0 0.0
    %144 = vmatprep.subr.mxu0 0.0
    %145 = vmatpush1.msra.mxu0 0.0
    %146 = vmatprep.subr.mxu0 0.0
    %147 = vmatpush1.msra.mxu0 0.0
    %148 = vmatprep.subr.mxu0 0.0
    %149 = vmatpush1.msra.mxu0 0.0
    %150 = vmatprep.subr.mxu0 0.0
    %151 = vmatpush1.msra.mxu0 0.0
    %152 = vmatprep.subr.mxu0 0.0
    %153 = vmatpush1.msra.mxu0 0.0
    %154 = vmatprep.subr.mxu0 0.0
    %155 = vmatpush1.msra.mxu0 0.0
    %156 = vmatprep.subr.mxu0 0.0
    %157 = vmatpush1.msra.mxu0 0.0
    %158 = vmatprep.subr.mxu0 0.0
    %159 = vmatpush1.msra.mxu0 0.0
    %160 = vmatprep.subr.mxu0 0.0
    %161 = vmatpush1.msra.mxu0 0.0
    %162 = vmatprep.mubr.f32.mxu0 0.0
    %163 = vmatmul.mubr.f32.gmra.mrb[0].mxu0 %v16
    %v164 = vpop.f32.mrb[0].mxu0
    %v165 = vadd.f32 0.0, %v164
    %v166 = vpop.f32.mrb[0].mxu0
    %167 = vdwg.mxu0
    %s168 = scalar_lea.vmem [#allocation2], 8
    %169 = vst [vmem:[%s168] sm:$0xff] %v165
    // Predicated region
    $region10: #{tpu_custom_call.1} parent=1 // pred_check
      _
    $region11: #{tpu_custom_call.1} parent=1 // pred_check_branch
      %171 = sbr.rel (0) target = $region13
    $region12: #{tpu_custom_call.1} parent=1 // pred_region
      %s173 = ssub.s32 256, 256
      %174 = vsyncadd [#allocation3], %s173
      %s175 = sshll.u32 [#allocation2], 4
      %s176 = int_to_ptr.vmem [resolvable:$true] %s175
      %181 = dma.vmem_to_hbm [thread:$0]  %s176, 256, %s2, [#allocation3], 128, 128, 8
    $region13: #{tpu_custom_call.1} parent=1 // pred_fallthru
      _
    // Predicated region
    $region14: #{tpu_custom_call.1} parent=1 // pred_check
      _
    $region15: #{tpu_custom_call.1} parent=1 // pred_check_branch
      %183 = sbr.rel (0) target = $region17
    $region16: #{tpu_custom_call.1} parent=1 // pred_region
      %184 = dma.done [#allocation3], 256
    $region17: #{tpu_custom_call.1} parent=1 // pred_fallthru
      _
    %185 = vsyncpa [#allocation3], 1

</llo_original>
